<compile_context>
chip_gen: v7x
topology: tpu7x:2x2x1
jax: 0.10.0
libtpu: 0.0.40
codegen_flags: <defaults>
</compile_context>

<pallas_src>
import jax
import jax.numpy as jnp
from jax.experimental import pallas as pl
from jax.experimental.pallas import tpu as pltpu


def _gru_recurrence_kernel(time_block, hidden):
    """Builds the Pallas kernel for given (static) time block size and hidden size."""
    TB = time_block
    H = hidden

    def kernel(len_smem, lens_ref, gi_ref, whh_ref, bhh_ref, out_ref, h_ref):
        # len_smem : (B_pad,)        int32  SMEM (scalar prefetch; sorted descending)
        # lens_ref : (B_pad, 1)      int32  VMEM (vector mask source)
        # gi_ref   : (TB, B_pad, 3H) f32/bf16  streamed precomputed x @ W_ih^T + b_ih
        # whh_ref  : (H, 3H)         f32/bf16  resident hidden->hidden weights (r|z|n)
        # bhh_ref  : (1, 3H)         f32       resident hidden bias
        # out_ref  : (B_pad, H)      f32       l2-normalized final hidden
        # h_ref    : (B_pad, H)      f32       carried hidden state (scratch)
        i = pl.program_id(0)
        t0 = i * TB
        max_len = len_smem[0]  # lengths sorted descending -> max sequence length

        @pl.when(i == 0)
        def _init():
            h_ref[...] = jnp.zeros_like(h_ref)

        # Skip time blocks that are entirely past every sequence's true length.
        @pl.when(t0 < max_len)
        def _recur():
            lengths = lens_ref[...]                    # (B_pad, 1) int32
            w_hh = whh_ref[...]                        # (H, 3H)
            b_hh = bhh_ref[...].astype(jnp.float32)    # (1, 3H)

            def step(tt, h):
                t = t0 + tt
                gi = gi_ref[tt].astype(jnp.float32)    # (B_pad, 3H)
                gh = jnp.dot(h.astype(w_hh.dtype), w_hh,
                             preferred_element_type=jnp.float32) + b_hh
                r = jax.nn.sigmoid(gi[:, 0:H] + gh[:, 0:H])
                z = jax.nn.sigmoid(gi[:, H:2 * H] + gh[:, H:2 * H])
                n = jnp.tanh(gi[:, 2 * H:] + r * gh[:, 2 * H:])
                h_new = (1.0 - z) * n + z * h
                # pack_padded_sequence: freeze rows past their true length.
                return jnp.where(lengths > t, h_new, h)

            h_ref[...] = jax.lax.fori_loop(0, TB, step, h_ref[...], unroll=True)

        @pl.when(i == pl.num_programs(0) - 1)
        def _finalize():
            h = h_ref[...]
            sumsq = jnp.sum(h * h, axis=1, keepdims=True)
            # eps guards zero-length / padded rows (norm == 0).
            inv_norm = jax.lax.rsqrt(jnp.maximum(sumsq, 1e-12))
            out_ref[...] = (h * inv_norm).astype(out_ref.dtype)

    return kernel


def encoder_text_forward(x_ids, lengths, params, *, time_block=8,
                         matmul_dtype=jnp.float32):
    """Embedding + hoisted input projection in XLA, GRU recurrence in Pallas."""
    embed_w, w_ih, w_hh, b_ih, b_hh = params
    B, T = x_ids.shape
    D = embed_w.shape[1]
    H = w_hh.shape[1]                       # torch layout: w_ih (3H, D), w_hh (3H, H)
    assert w_ih.shape == (3 * H, D) and w_hh.shape == (3 * H, H)

    # ---- Hoisted input projection, gathered directly time-major. ----------------
    emb_tm = jnp.take(embed_w.astype(jnp.float32), x_ids.T, axis=0)      # (T, B, D)
    gi_all = (emb_tm.reshape(T * B, D) @ w_ih.T.astype(jnp.float32)
              + b_ih.astype(jnp.float32)).reshape(T, B, 3 * H)           # (T, B, 3H)

    # ---- Padding: batch to a sublane multiple, time to a multiple of TB. --------
    TB = int(min(time_block, max(T, 1)))
    B_pad = max(8, ((B + 7) // 8) * 8)
    T_pad = ((T + TB - 1) // TB) * TB
    gi_all = jnp.pad(gi_all, ((0, T_pad - T), (0, B_pad - B), (0, 0)))
    gi_all = gi_all.astype(matmul_dtype)

    # pack_padded_sequence contract: lengths sorted descending, 1 <= len <= T.
    # Padded batch rows get length 0 (kept frozen at h = 0; sliced off below).
    lengths_pad = jnp.concatenate(
        [lengths.astype(jnp.int32), jnp.zeros((B_pad - B,), jnp.int32)])

    w_hh_k = jnp.transpose(w_hh).astype(matmul_dtype)                    # (H, 3H)
    b_hh_k = b_hh.reshape(1, 3 * H).astype(jnp.float32)

    n_blocks = T_pad // TB

    # VMEM budget: 2 double-buffered gi blocks + resident weights/bias/lengths +
    # h scratch + output.  Capped for v7x's 64 MiB physical VMEM; harmless elsewhere.
    itemsize = jnp.dtype(matmul_dtype).itemsize
    gi_block_bytes = TB * B_pad * 3 * H * itemsize
    resident_bytes = (H * 3 * H * itemsize            # w_hh
                      + 3 * H * 4 + B_pad * 4         # b_hh, lengths
                      + 2 * B_pad * H * 4)            # h scratch + output
    vmem_limit = int(min(max(4 * gi_block_bytes + 2 * resident_bytes + (1 << 20),
                             16 * 1024 * 1024),
                         48 * 1024 * 1024))

    grid_spec = pltpu.PrefetchScalarGridSpec(
        num_scalar_prefetch=1,                        # lengths -> SMEM
        grid=(n_blocks,),
        in_specs=[
            pl.BlockSpec((B_pad, 1), lambda i, lens: (0, 0)),              # lengths (mask)
            pl.BlockSpec((TB, B_pad, 3 * H), lambda i, lens: (i, 0, 0)),   # streamed gi
            pl.BlockSpec((H, 3 * H), lambda i, lens: (0, 0)),              # w_hh resident
            pl.BlockSpec((1, 3 * H), lambda i, lens: (0, 0)),              # b_hh resident
        ],
        out_specs=pl.BlockSpec((B_pad, H), lambda i, lens: (0, 0)),
        scratch_shapes=[pltpu.VMEM((B_pad, H), jnp.float32)],              # carried h
    )

    out_pad = pl.pallas_call(
        _gru_recurrence_kernel(TB, H),
        out_shape=jax.ShapeDtypeStruct((B_pad, H), jnp.float32),
        grid_spec=grid_spec,
        compiler_params=pltpu.CompilerParams(
            dimension_semantics=("arbitrary",),       # time axis carries state
            vmem_limit_bytes=vmem_limit,
        ),
    )(
        lengths_pad,                        # scalar prefetch -> SMEM
        lengths_pad.reshape(B_pad, 1),      # same lengths as VMEM column for masking
        gi_all,
        w_hh_k,
        b_hh_k,
    )
    return out_pad[:B]


def encoder_text_reference(x_ids, lengths, params):
    """Pure-JAX reference of the same forward (sanity check)."""
    embed_w, w_ih, w_hh, b_ih, b_hh = params
    B, T = x_ids.shape
    H = w_hh.shape[1]
    emb = jnp.take(embed_w, x_ids, axis=0)            # (B, T, D)

    def step(h, inputs):
        x_t, t = inputs
        gi = x_t @ w_ih.T + b_ih
        gh = h @ w_hh.T + b_hh
        r = jax.nn.sigmoid(gi[:, 0:H] + gh[:, 0:H])
        z = jax.nn.sigmoid(gi[:, H:2 * H] + gh[:, H:2 * H])
        n = jnp.tanh(gi[:, 2 * H:] + r * gh[:, 2 * H:])
        h_new = (1.0 - z) * n + z * h
        h = jnp.where(lengths[:, None] > t, h_new, h)
        return h, None

    h0 = jnp.zeros((B, H), jnp.float32)
    xs = (jnp.transpose(emb, (1, 0, 2)), jnp.arange(T))
    h_final, _ = jax.lax.scan(step, h0, xs)
    norm = jnp.sqrt(jnp.sum(h_final ** 2, axis=1, keepdims=True))
    return h_final / norm


if __name__ == "__main__":
    # Small shapes consistent with the module (H multiple of 128 so the gate slices
    # are lane-aligned, matching the real model's layout path).
    vocab_size, word_dim, embed_size, num_layers = 50, 32, 128, 1
    B, T = 2, 16

    key = jax.random.PRNGKey(0)
    k_emb, k_wih, k_whh, k_bih, k_bhh, k_x = jax.random.split(key, 6)

    embed_w = jax.random.uniform(k_emb, (vocab_size, word_dim),
                                 minval=-0.1, maxval=0.1, dtype=jnp.float32)
    s = 1.0 / (embed_size ** 0.5)          # PyTorch GRU default init range
    w_ih = jax.random.uniform(k_wih, (3 * embed_size, word_dim),
                              minval=-s, maxval=s, dtype=jnp.float32)
    w_hh = jax.random.uniform(k_whh, (3 * embed_size, embed_size),
                              minval=-s, maxval=s, dtype=jnp.float32)
    b_ih = jax.random.uniform(k_bih, (3 * embed_size,),
                              minval=-s, maxval=s, dtype=jnp.float32)
    b_hh = jax.random.uniform(k_bhh, (3 * embed_size,),
                              minval=-s, maxval=s, dtype=jnp.float32)
    params = (embed_w, w_ih, w_hh, b_ih, b_hh)

    x_ids = jax.random.randint(k_x, (B, T), 0, vocab_size, dtype=jnp.int32)
    # Descending lengths (pack_padded_sequence requirement); max(lengths) < T so
    # the trailing time block (t0 = 12) exercises the "skip fully-masked blocks" path.
    lengths = jnp.array([9, 5], dtype=jnp.int32)

    out = jax.block_until_ready(
        encoder_text_forward(x_ids, lengths, params, time_block=4))
    ref = jax.block_until_ready(encoder_text_reference(x_ids, lengths, params))

    assert out.shape == (B, embed_size)
    assert jnp.allclose(out, ref, atol=1e-4, rtol=1e-4), "f32 kernel mismatch vs JAX reference"
    assert jnp.allclose(jnp.linalg.norm(out, axis=1), 1.0, atol=1e-4)

    # bf16 MXU path for the recurrence matmul (f32 accumulation / gate math).
    out_bf16 = jax.block_until_ready(
        encoder_text_forward(x_ids, lengths, params, time_block=4,
                             matmul_dtype=jnp.bfloat16))
    assert out_bf16.shape == (B, embed_size)
    assert jnp.allclose(out_bf16, ref, atol=5e-2), "bf16 kernel deviates too far from reference"

    print("KERNEL_OK")
</pallas_src>

<mosaic_0001>
module attributes {stable_mosaic.version = 11 : i64} {
  func.func @kernel(%arg0: i32, %arg1: memref<8xi32, #tpu.memory_space<smem>>, %arg2: memref<8x1xi32, #tpu.memory_space<vmem>>, %arg3: memref<4x8x384xf32, #tpu.memory_space<vmem>>, %arg4: memref<128x384xf32, #tpu.memory_space<vmem>>, %arg5: memref<1x384xf32, #tpu.memory_space<vmem>>, %arg6: memref<8x128xf32, #tpu.memory_space<vmem>>, %arg7: memref<8x128xf32, #tpu.memory_space<vmem>>) attributes {dimension_semantics = [#tpu.dimension_semantics<arbitrary>], iteration_bounds = array<i64: 4>, scalar_prefetch = 1 : i64, scratch_operands = 1 : i64, tpu.core_type = #tpu.core_type<tc>, window_params = [{pipeline_mode = #tpu.pipeline_mode<synchronous>, transform_indices = @transform_0, window_bounds = array<i64: 8, 1>}, {transform_indices = @transform_1, window_bounds = array<i64: 4, 8, 384>}, {pipeline_mode = #tpu.pipeline_mode<synchronous>, transform_indices = @transform_2, window_bounds = array<i64: 128, 384>}, {pipeline_mode = #tpu.pipeline_mode<synchronous>, transform_indices = @transform_3, window_bounds = array<i64: 1, 384>}, {pipeline_mode = #tpu.pipeline_mode<synchronous>, transform_indices = @transform_4, window_bounds = array<i64: 8, 128>}]} {
    %c4_i32 = arith.constant 4 : i32
    %0 = arith.muli %arg0, %c4_i32 : i32
    %c0 = arith.constant 0 : index
    %1 = memref.load %arg1[%c0] : memref<8xi32, #tpu.memory_space<smem>>
    %c0_i32 = arith.constant 0 : i32
    %2 = arith.cmpi eq, %arg0, %c0_i32 : i32
    %3 = arith.extui %2 : i1 to i32
    %c0_i32_0 = arith.constant 0 : i32
    %4 = arith.cmpi ne, %3, %c0_i32_0 : i32
    scf.if %4 {
      %cst = arith.constant 0.000000e+00 : f32
      %11 = vector.broadcast %cst : f32 to vector<8x128xf32>
      %c0_3 = arith.constant 0 : index
      %c0_4 = arith.constant 0 : index
      %12 = vector.load %arg7[%c0_3, %c0_4] : memref<8x128xf32, #tpu.memory_space<vmem>>, vector<8x128xf32>
      tpu.vector_store %arg7[%c0_3, %c0_4], %11 {strides = array<i32>} : memref<8x128xf32, #tpu.memory_space<vmem>>, vector<8x128xf32>,
    } else {
    }
    %5 = arith.cmpi slt, %0, %1 : i32
    %6 = arith.extui %5 : i1 to i32
    %c0_i32_1 = arith.constant 0 : i32
    %7 = arith.cmpi ne, %6, %c0_i32_1 : i32
    scf.if %7 {
      %c0_3 = arith.constant 0 : index
      %c0_4 = arith.constant 0 : index
      %11 = vector.load %arg2[%c0_3, %c0_4] : memref<8x1xi32, #tpu.memory_space<vmem>>, vector<8x1xi32>
      %c0_5 = arith.constant 0 : index
      %c0_6 = arith.constant 0 : index
      %12 = vector.load %arg4[%c0_5, %c0_6] : memref<128x384xf32, #tpu.memory_space<vmem>>, vector<128x384xf32>
      %c0_7 = arith.constant 0 : index
      %c0_8 = arith.constant 0 : index
      %13 = vector.load %arg5[%c0_7, %c0_8] : memref<1x384xf32, #tpu.memory_space<vmem>>, vector<1x384xf32>
      %c0_9 = arith.constant 0 : index
      %c0_10 = arith.constant 0 : index
      %14 = vector.load %arg7[%c0_9, %c0_10] : memref<8x128xf32, #tpu.memory_space<vmem>>, vector<8x128xf32>
      %c0_i32_11 = arith.constant 0 : i32
      %15 = arith.addi %0, %c0_i32_11 : i32
      %16 = arith.index_cast %c0_i32_11 : i32 to index
      %c0_12 = arith.constant 0 : index
      %c0_13 = arith.constant 0 : index
      %17 = vector.load %arg3[%16, %c0_12, %c0_13] : memref<4x8x384xf32, #tpu.memory_space<vmem>>, vector<1x8x384xf32>
      %18 = vector.shape_cast %17 : vector<1x8x384xf32> to vector<8x384xf32>
      %cst = arith.constant dense<0.000000e+00> : vector<8x384xf32>
      %19 = tpu.matmul %14, %12, %cst {dimension_numbers = #tpu.dot_dimension_numbers<[1], [0], [0], [1], [0, 0, 1, 1], [], []>} : vector<8x128xf32>, vector<128x384xf32>, vector<8x384xf32> -> vector<8x384xf32>
      %20 = vector.broadcast %13 : vector<1x384xf32> to vector<8x384xf32>
      %21 = arith.addf %19, %20 : vector<8x384xf32>
      %22 = vector.extract_strided_slice %18 {offsets = [0, 0], sizes = [8, 128], strides = [1, 1]} : vector<8x384xf32> to vector<8x128xf32>
      %23 = vector.extract_strided_slice %21 {offsets = [0, 0], sizes = [8, 128], strides = [1, 1]} : vector<8x384xf32> to vector<8x128xf32>
      %24 = arith.addf %22, %23 : vector<8x128xf32>
      %25 = arith.negf %24 : vector<8x128xf32>
      %26 = math.exp %25 : vector<8x128xf32>
      %cst_14 = arith.constant 1.000000e+00 : f32
      %27 = vector.broadcast %cst_14 : f32 to vector<8x128xf32>
      %28 = arith.addf %27, %26 : vector<8x128xf32>
      %29 = arith.divf %27, %28 : vector<8x128xf32>
      %30 = vector.extract_strided_slice %18 {offsets = [0, 128], sizes = [8, 128], strides = [1, 1]} : vector<8x384xf32> to vector<8x128xf32>
      %31 = vector.extract_strided_slice %21 {offsets = [0, 128], sizes = [8, 128], strides = [1, 1]} : vector<8x384xf32> to vector<8x128xf32>
      %32 = arith.addf %30, %31 : vector<8x128xf32>
      %33 = arith.negf %32 : vector<8x128xf32>
      %34 = math.exp %33 : vector<8x128xf32>
      %cst_15 = arith.constant 1.000000e+00 : f32
      %35 = vector.broadcast %cst_15 : f32 to vector<8x128xf32>
      %36 = arith.addf %35, %34 : vector<8x128xf32>
      %37 = arith.divf %35, %36 : vector<8x128xf32>
      %38 = vector.extract_strided_slice %18 {offsets = [0, 256], sizes = [8, 128], strides = [1, 1]} : vector<8x384xf32> to vector<8x128xf32>
      %39 = vector.extract_strided_slice %21 {offsets = [0, 256], sizes = [8, 128], strides = [1, 1]} : vector<8x384xf32> to vector<8x128xf32>
      %40 = arith.mulf %29, %39 : vector<8x128xf32>
      %41 = arith.addf %38, %40 : vector<8x128xf32>
      %42 = math.tanh %41 : vector<8x128xf32>
      %cst_16 = arith.constant 1.000000e+00 : f32
      %43 = vector.broadcast %cst_16 : f32 to vector<8x128xf32>
      %44 = arith.subf %43, %37 : vector<8x128xf32>
      %45 = arith.mulf %44, %42 : vector<8x128xf32>
      %46 = arith.mulf %37, %14 : vector<8x128xf32>
      %47 = arith.addf %45, %46 : vector<8x128xf32>
      %48 = vector.broadcast %15 : i32 to vector<8x1xi32>
      %49 = arith.cmpi sgt, %11, %48 : vector<8x1xi32>
      %50 = vector.shape_cast %49 : vector<8x1xi1> to vector<8x1xi1>
      %51 = vector.broadcast %50 : vector<8x1xi1> to vector<8x128xi1>
      %52 = arith.select %51, %47, %14 : vector<8x128xi1>, vector<8x128xf32>
      %c1_i32 = arith.constant 1 : i32
      %53 = arith.addi %0, %c1_i32 : i32
      %54 = arith.index_cast %c1_i32 : i32 to index
      %c0_17 = arith.constant 0 : index
      %c0_18 = arith.constant 0 : index
      %55 = vector.load %arg3[%54, %c0_17, %c0_18] : memref<4x8x384xf32, #tpu.memory_space<vmem>>, vector<1x8x384xf32>
      %56 = vector.shape_cast %55 : vector<1x8x384xf32> to vector<8x384xf32>
      %cst_19 = arith.constant dense<0.000000e+00> : vector<8x384xf32>
      %57 = tpu.matmul %52, %12, %cst_19 {dimension_numbers = #tpu.dot_dimension_numbers<[1], [0], [0], [1], [0, 0, 1, 1], [], []>} : vector<8x128xf32>, vector<128x384xf32>, vector<8x384xf32> -> vector<8x384xf32>
      %58 = vector.broadcast %13 : vector<1x384xf32> to vector<8x384xf32>
      %59 = arith.addf %57, %58 : vector<8x384xf32>
      %60 = vector.extract_strided_slice %56 {offsets = [0, 0], sizes = [8, 128], strides = [1, 1]} : vector<8x384xf32> to vector<8x128xf32>
      %61 = vector.extract_strided_slice %59 {offsets = [0, 0], sizes = [8, 128], strides = [1, 1]} : vector<8x384xf32> to vector<8x128xf32>
      %62 = arith.addf %60, %61 : vector<8x128xf32>
      %63 = arith.negf %62 : vector<8x128xf32>
      %64 = math.exp %63 : vector<8x128xf32>
      %cst_20 = arith.constant 1.000000e+00 : f32
      %65 = vector.broadcast %cst_20 : f32 to vector<8x128xf32>
      %66 = arith.addf %65, %64 : vector<8x128xf32>
      %67 = arith.divf %65, %66 : vector<8x128xf32>
      %68 = vector.extract_strided_slice %56 {offsets = [0, 128], sizes = [8, 128], strides = [1, 1]} : vector<8x384xf32> to vector<8x128xf32>
      %69 = vector.extract_strided_slice %59 {offsets = [0, 128], sizes = [8, 128], strides = [1, 1]} : vector<8x384xf32> to vector<8x128xf32>
      %70 = arith.addf %68, %69 : vector<8x128xf32>
      %71 = arith.negf %70 : vector<8x128xf32>
      %72 = math.exp %71 : vector<8x128xf32>
      %cst_21 = arith.constant 1.000000e+00 : f32
      %73 = vector.broadcast %cst_21 : f32 to vector<8x128xf32>
      %74 = arith.addf %73, %72 : vector<8x128xf32>
      %75 = arith.divf %73, %74 : vector<8x128xf32>
      %76 = vector.extract_strided_slice %56 {offsets = [0, 256], sizes = [8, 128], strides = [1, 1]} : vector<8x384xf32> to vector<8x128xf32>
      %77 = vector.extract_strided_slice %59 {offsets = [0, 256], sizes = [8, 128], strides = [1, 1]} : vector<8x384xf32> to vector<8x128xf32>
      %78 = arith.mulf %67, %77 : vector<8x128xf32>
      %79 = arith.addf %76, %78 : vector<8x128xf32>
      %80 = math.tanh %79 : vector<8x128xf32>
      %cst_22 = arith.constant 1.000000e+00 : f32
      %81 = vector.broadcast %cst_22 : f32 to vector<8x128xf32>
      %82 = arith.subf %81, %75 : vector<8x128xf32>
      %83 = arith.mulf %82, %80 : vector<8x128xf32>
      %84 = arith.mulf %75, %52 : vector<8x128xf32>
      %85 = arith.addf %83, %84 : vector<8x128xf32>
      %86 = vector.broadcast %53 : i32 to vector<8x1xi32>
      %87 = arith.cmpi sgt, %11, %86 : vector<8x1xi32>
      %88 = vector.shape_cast %87 : vector<8x1xi1> to vector<8x1xi1>
      %89 = vector.broadcast %88 : vector<8x1xi1> to vector<8x128xi1>
      %90 = arith.select %89, %85, %52 : vector<8x128xi1>, vector<8x128xf32>
      %c2_i32 = arith.constant 2 : i32
      %91 = arith.addi %0, %c2_i32 : i32
      %92 = arith.index_cast %c2_i32 : i32 to index
      %c0_23 = arith.constant 0 : index
      %c0_24 = arith.constant 0 : index
      %93 = vector.load %arg3[%92, %c0_23, %c0_24] : memref<4x8x384xf32, #tpu.memory_space<vmem>>, vector<1x8x384xf32>
      %94 = vector.shape_cast %93 : vector<1x8x384xf32> to vector<8x384xf32>
      %cst_25 = arith.constant dense<0.000000e+00> : vector<8x384xf32>
      %95 = tpu.matmul %90, %12, %cst_25 {dimension_numbers = #tpu.dot_dimension_numbers<[1], [0], [0], [1], [0, 0, 1, 1], [], []>} : vector<8x128xf32>, vector<128x384xf32>, vector<8x384xf32> -> vector<8x384xf32>
      %96 = vector.broadcast %13 : vector<1x384xf32> to vector<8x384xf32>
      %97 = arith.addf %95, %96 : vector<8x384xf32>
      %98 = vector.extract_strided_slice %94 {offsets = [0, 0], sizes = [8, 128], strides = [1, 1]} : vector<8x384xf32> to vector<8x128xf32>
      %99 = vector.extract_strided_slice %97 {offsets = [0, 0], sizes = [8, 128], strides = [1, 1]} : vector<8x384xf32> to vector<8x128xf32>
      %100 = arith.addf %98, %99 : vector<8x128xf32>
      %101 = arith.negf %100 : vector<8x128xf32>
      %102 = math.exp %101 : vector<8x128xf32>
      %cst_26 = arith.constant 1.000000e+00 : f32
      %103 = vector.broadcast %cst_26 : f32 to vector<8x128xf32>
      %104 = arith.addf %103, %102 : vector<8x128xf32>
      %105 = arith.divf %103, %104 : vector<8x128xf32>
      %106 = vector.extract_strided_slice %94 {offsets = [0, 128], sizes = [8, 128], strides = [1, 1]} : vector<8x384xf32> to vector<8x128xf32>
      %107 = vector.extract_strided_slice %97 {offsets = [0, 128], sizes = [8, 128], strides = [1, 1]} : vector<8x384xf32> to vector<8x128xf32>
      %108 = arith.addf %106, %107 : vector<8x128xf32>
      %109 = arith.negf %108 : vector<8x128xf32>
      %110 = math.exp %109 : vector<8x128xf32>
      %cst_27 = arith.constant 1.000000e+00 : f32
      %111 = vector.broadcast %cst_27 : f32 to vector<8x128xf32>
      %112 = arith.addf %111, %110 : vector<8x128xf32>
      %113 = arith.divf %111, %112 : vector<8x128xf32>
      %114 = vector.extract_strided_slice %94 {offsets = [0, 256], sizes = [8, 128], strides = [1, 1]} : vector<8x384xf32> to vector<8x128xf32>
      %115 = vector.extract_strided_slice %97 {offsets = [0, 256], sizes = [8, 128], strides = [1, 1]} : vector<8x384xf32> to vector<8x128xf32>
      %116 = arith.mulf %105, %115 : vector<8x128xf32>
      %117 = arith.addf %114, %116 : vector<8x128xf32>
      %118 = math.tanh %117 : vector<8x128xf32>
      %cst_28 = arith.constant 1.000000e+00 : f32
      %119 = vector.broadcast %cst_28 : f32 to vector<8x128xf32>
      %120 = arith.subf %119, %113 : vector<8x128xf32>
      %121 = arith.mulf %120, %118 : vector<8x128xf32>
      %122 = arith.mulf %113, %90 : vector<8x128xf32>
      %123 = arith.addf %121, %122 : vector<8x128xf32>
      %124 = vector.broadcast %91 : i32 to vector<8x1xi32>
      %125 = arith.cmpi sgt, %11, %124 : vector<8x1xi32>
      %126 = vector.shape_cast %125 : vector<8x1xi1> to vector<8x1xi1>
      %127 = vector.broadcast %126 : vector<8x1xi1> to vector<8x128xi1>
      %128 = arith.select %127, %123, %90 : vector<8x128xi1>, vector<8x128xf32>
      %c3_i32_29 = arith.constant 3 : i32
      %129 = arith.addi %0, %c3_i32_29 : i32
      %130 = arith.index_cast %c3_i32_29 : i32 to index
      %c0_30 = arith.constant 0 : index
      %c0_31 = arith.constant 0 : index
      %131 = vector.load %arg3[%130, %c0_30, %c0_31] : memref<4x8x384xf32, #tpu.memory_space<vmem>>, vector<1x8x384xf32>
      %132 = vector.shape_cast %131 : vector<1x8x384xf32> to vector<8x384xf32>
      %cst_32 = arith.constant dense<0.000000e+00> : vector<8x384xf32>
      %133 = tpu.matmul %128, %12, %cst_32 {dimension_numbers = #tpu.dot_dimension_numbers<[1], [0], [0], [1], [0, 0, 1, 1], [], []>} : vector<8x128xf32>, vector<128x384xf32>, vector<8x384xf32> -> vector<8x384xf32>
      %134 = vector.broadcast %13 : vector<1x384xf32> to vector<8x384xf32>
      %135 = arith.addf %133, %134 : vector<8x384xf32>
      %136 = vector.extract_strided_slice %132 {offsets = [0, 0], sizes = [8, 128], strides = [1, 1]} : vector<8x384xf32> to vector<8x128xf32>
      %137 = vector.extract_strided_slice %135 {offsets = [0, 0], sizes = [8, 128], strides = [1, 1]} : vector<8x384xf32> to vector<8x128xf32>
      %138 = arith.addf %136, %137 : vector<8x128xf32>
      %139 = arith.negf %138 : vector<8x128xf32>
      %140 = math.exp %139 : vector<8x128xf32>
      %cst_33 = arith.constant 1.000000e+00 : f32
      %141 = vector.broadcast %cst_33 : f32 to vector<8x128xf32>
      %142 = arith.addf %141, %140 : vector<8x128xf32>
      %143 = arith.divf %141, %142 : vector<8x128xf32>
      %144 = vector.extract_strided_slice %132 {offsets = [0, 128], sizes = [8, 128], strides = [1, 1]} : vector<8x384xf32> to vector<8x128xf32>
      %145 = vector.extract_strided_slice %135 {offsets = [0, 128], sizes = [8, 128], strides = [1, 1]} : vector<8x384xf32> to vector<8x128xf32>
      %146 = arith.addf %144, %145 : vector<8x128xf32>
      %147 = arith.negf %146 : vector<8x128xf32>
      %148 = math.exp %147 : vector<8x128xf32>
      %cst_34 = arith.constant 1.000000e+00 : f32
      %149 = vector.broadcast %cst_34 : f32 to vector<8x128xf32>
      %150 = arith.addf %149, %148 : vector<8x128xf32>
      %151 = arith.divf %149, %150 : vector<8x128xf32>
      %152 = vector.extract_strided_slice %132 {offsets = [0, 256], sizes = [8, 128], strides = [1, 1]} : vector<8x384xf32> to vector<8x128xf32>
      %153 = vector.extract_strided_slice %135 {offsets = [0, 256], sizes = [8, 128], strides = [1, 1]} : vector<8x384xf32> to vector<8x128xf32>
      %154 = arith.mulf %143, %153 : vector<8x128xf32>
      %155 = arith.addf %152, %154 : vector<8x128xf32>
      %156 = math.tanh %155 : vector<8x128xf32>
      %cst_35 = arith.constant 1.000000e+00 : f32
      %157 = vector.broadcast %cst_35 : f32 to vector<8x128xf32>
      %158 = arith.subf %157, %151 : vector<8x128xf32>
      %159 = arith.mulf %158, %156 : vector<8x128xf32>
      %160 = arith.mulf %151, %128 : vector<8x128xf32>
      %161 = arith.addf %159, %160 : vector<8x128xf32>
      %162 = vector.broadcast %129 : i32 to vector<8x1xi32>
      %163 = arith.cmpi sgt, %11, %162 : vector<8x1xi32>
      %164 = vector.shape_cast %163 : vector<8x1xi1> to vector<8x1xi1>
      %165 = vector.broadcast %164 : vector<8x1xi1> to vector<8x128xi1>
      %166 = arith.select %165, %161, %128 : vector<8x128xi1>, vector<8x128xf32>
      %c4_i32_36 = arith.constant 4 : i32
      %c0_37 = arith.constant 0 : index
      %c0_38 = arith.constant 0 : index
      %167 = vector.load %arg7[%c0_37, %c0_38] : memref<8x128xf32, #tpu.memory_space<vmem>>, vector<8x128xf32>
      tpu.vector_store %arg7[%c0_37, %c0_38], %166 {strides = array<i32>} : memref<8x128xf32, #tpu.memory_space<vmem>>, vector<8x128xf32>,
    } else {
    }
    %c3_i32 = arith.constant 3 : i32
    %8 = arith.cmpi eq, %arg0, %c3_i32 : i32
    %9 = arith.extui %8 : i1 to i32
    %c0_i32_2 = arith.constant 0 : i32
    %10 = arith.cmpi ne, %9, %c0_i32_2 : i32
    scf.if %10 {
      %c0_3 = arith.constant 0 : index
      %c0_4 = arith.constant 0 : index
      %11 = vector.load %arg7[%c0_3, %c0_4] : memref<8x128xf32, #tpu.memory_space<vmem>>, vector<8x128xf32>
      %12 = arith.mulf %11, %11 : vector<8x128xf32>
      %cst = arith.constant dense<0.000000e+00> : vector<8xf32>
      %13 = vector.multi_reduction <add>, %12, %cst [1] : vector<8x128xf32> to vector<8xf32>
      %14 = vector.shape_cast %13 : vector<8xf32> to vector<8x1xf32>
      %cst_5 = arith.constant 9.99999996E-13 : f32
      %15 = vector.broadcast %cst_5 : f32 to vector<8x1xf32>
      %16 = arith.maximumf %14, %15 : vector<8x1xf32>
      %17 = math.rsqrt %16 : vector<8x1xf32>
      %18 = vector.broadcast %17 : vector<8x1xf32> to vector<8x128xf32>
      %19 = arith.mulf %11, %18 : vector<8x128xf32>
      %c0_6 = arith.constant 0 : index
      %c0_7 = arith.constant 0 : index
      %20 = vector.load %arg6[%c0_6, %c0_7] : memref<8x128xf32, #tpu.memory_space<vmem>>, vector<8x128xf32>
      tpu.vector_store %arg6[%c0_6, %c0_7], %19 {strides = array<i32>} : memref<8x128xf32, #tpu.memory_space<vmem>>, vector<8x128xf32>,
    } else {
    }
    return
  }
  func.func @transform_0(%arg0: i32, %arg1: memref<8xi32, #tpu.memory_space<smem>>) -> (i32, i32) {
    %c0_i32 = arith.constant 0 : i32
    %c0_i32_0 = arith.constant 0 : i32
    %c0_i32_1 = arith.constant 0 : i32
    return %c0_i32, %c0_i32_0 : i32, i32
  }
  func.func @transform_1(%arg0: i32, %arg1: memref<8xi32, #tpu.memory_space<smem>>) -> (i32, i32, i32) {
    %c0_i32 = arith.constant 0 : i32
    %c0_i32_0 = arith.constant 0 : i32
    %c0_i32_1 = arith.constant 0 : i32
    return %arg0, %c0_i32, %c0_i32_0 : i32, i32, i32
  }
  func.func @transform_2(%arg0: i32, %arg1: memref<8xi32, #tpu.memory_space<smem>>) -> (i32, i32) {
    %c0_i32 = arith.constant 0 : i32
    %c0_i32_0 = arith.constant 0 : i32
    %c0_i32_1 = arith.constant 0 : i32
    return %c0_i32, %c0_i32_0 : i32, i32
  }
  func.func @transform_3(%arg0: i32, %arg1: memref<8xi32, #tpu.memory_space<smem>>) -> (i32, i32) {
    %c0_i32 = arith.constant 0 : i32
    %c0_i32_0 = arith.constant 0 : i32
    %c0_i32_1 = arith.constant 0 : i32
    return %c0_i32, %c0_i32_0 : i32, i32
  }
  func.func @transform_4(%arg0: i32, %arg1: memref<8xi32, #tpu.memory_space<smem>>) -> (i32, i32) {
    %c0_i32 = arith.constant 0 : i32
    %c0_i32_0 = arith.constant 0 : i32
    %c0_i32_1 = arith.constant 0 : i32
    return %c0_i32, %c0_i32_0 : i32, i32
  }
}

</mosaic_0001>

<llo_original>
// kernel: tpu_custom_call.1
$region0: #{tpu_custom_call.1}
  #allocation0 [shape = 'u32[]', space=smem, size = 0x4, offset = 0x4, fixed_abs, tag = 'smem constant byte address 0x4 - core index']
  #allocation1 [shape = 'u32[144,128]{1,0:T(1,128)}', space=vmem, size = 0x12000, scoped, tag = 'internal scratch']
  #allocation2 [shape = 'f32[8,128]{1,0:T(8,128)}', space=vmem, size = 0x1000, scoped, tag = 'scratch operand']
  #allocation3 [shape = 's32[1]{0}', space=sflag, size = 0x4, scoped, tag = 'scoped memory for tpu_custom_call.1']
  #allocation4 [shape = 'u8[512]{0}', space=smem, size = 0x200, scoped, tag = 'prefetched SMEM operand 0']
  %s0 = inlined_call_operand.vmem [shape: s32[8], index: 0, kind: input, shape index: {}]
  %s1 = inlined_call_operand.vmem [shape: s32[8,1], index: 1, kind: input, shape index: {}]
  %s2 = inlined_call_operand.hbm [shape: f32[16,8,384], index: 2, kind: input, shape index: {}]
  %s3 = inlined_call_operand.hbm [shape: f32[128,384], index: 3, kind: input, shape index: {}]
  %s4 = inlined_call_operand.vmem [shape: f32[1,384], index: 4, kind: input, shape index: {}]
  %s5 = inlined_call_operand.hbm [shape: f32[8,128], index: 5, kind: output, shape index: {}]
  %s6 = sld [smem:[#allocation0]]
  $region69: #{tpu_custom_call.1} parent=0
    _
  %s8 = ssub.s32 1, %s6
  %s9 = scalar_select 0, %s8, %s6
  %s10 = sshll.u32 %s0, 4
  %s11 = int_to_ptr.vmem [resolvable:$true] %s10
  %13 = dma.vmem_to_smem %s11, 16, [#allocation4], [#allocation3]
  %14 = dma.done [#allocation3], 16
  %15 = sfence
  $region1: #{tpu_custom_call.1} parent=0
    #allocation5 [shape = 'u8[98304]{0}', space=vmem, size = 0x18000, scoped, tag = 'input window, operand 2']
    #allocation6 [shape = 's32[2]{0}', space=sflag, size = 0x8, scoped, tag = 'scoped memory for tpu_custom_call.1']
    #allocation7 [shape = 's32[2]{0}', space=sflag, size = 0x8, scoped, tag = 'scoped memory for tpu_custom_call.1']
    #allocation8 [shape = 'u8[196608]{0}', space=vmem, size = 0x30000, scoped, tag = 'input window, operand 3, single buffered']
    #allocation9 [shape = 's32[1]{0}', space=sflag, size = 0x4, scoped, tag = 'scoped memory for tpu_custom_call.1']
    #allocation10 [shape = 'u8[4096]{0}', space=vmem, size = 0x1000, scoped, tag = 'output window, operand 0, single buffered']
    %16 = vsyncpa [#allocation6], 0
    %s17 = scalar_lea.sflag [#allocation6], 1
    %18 = vsyncpa %s17, 0
    %19 = vsyncpa [#allocation9], 0
    %20 = vsyncpa [#allocation7], 0
    loop: start=0, step=1, limit=6
    $region2: #{tpu_custom_call.1} parent=1 // loop_pre_header
      _
    $region3: #{tpu_custom_call.1} parent=1 // loop_header
      %s22 = sphi 0, %s26
      %p23 = scmp.ge.s32.totalorder %s22, 6
      %s30 = sphi 0, %s30
      %s32 = sphi 0, %s30
      %s33 = sphi 0, %s32
      %s47 = sphi 0, %s33
      %s53 = sphi 0, %s55
      %s56 = sphi 0, %s53
      %s57 = sphi 0, %s56
      %s73 = sphi 0, %s57
      %s77 = sphi 0, %s77
      %s79 = sphi 0, %s77
      %s80 = sphi 0, %s79
      %s94 = sphi 0, %s80
      %s98 = sphi 0, %s98
      %s100 = sphi 0, %s98
      %s101 = sphi 0, %s100
      %s115 = sphi 0, %s101
      %s119 = sphi 0, %s119
      %s121 = sphi 0, %s119
      %s122 = sphi 0, %s121
      %s136 = sphi 0, %s122
    $region4: #{tpu_custom_call.1} parent=1 // loop_header_branch
      %25 = sbr.rel (%p23) target = $region8
    $region5: #{tpu_custom_call.1} parent=1 // loop_body
      %s27 = ssub.s32 %s22, 1
      %s28 = ssub.s32 %s22, 2
      %s29 = sadd.s32 %s22, 1
      %s31 = sadd.s32 %s30, 1
      %p34 = scmp.eq.s32.totalorder %s22, 3
      %p35 = scmp.ne.s32.totalorder %s30, %s32
      %p36 = scmp.eq.s32.totalorder %s22, 0
      %p37 = por %p35, %p36
      %p38 = scmp.ne.s32.totalorder %s30, %s32
      %p39 = scmp.eq.s32.totalorder %s27, 3
      %p40 = por %p38, %p39
      %p41 = scmp.ne.s32.totalorder %s32, %s33
      %p42 = scmp.eq.s32.totalorder %s27, 0
      %p43 = por %p41, %p42
      %p44 = scmp.ne.s32.totalorder %s32, %s33
      %p45 = scmp.eq.s32.totalorder %s28, 3
      %p46 = por %p44, %p45
      %p48 = scmp.ne.s32.totalorder %s33, %s47
      %p49 = scmp.eq.s32.totalorder %s28, 0
      %p50 = por %p48, %p49
      %s51 = ssub.s32 %s22, %s29
      %p52 = scmp.eq.s32.totalorder %s51, 0
      %s54 = sadd.s32 %s53, 1
      %s55 = scalar_select %p52, %s53, %s54
      %p58 = pneg %p52
      %p59 = scmp.eq.s32.totalorder %s22, 3
      %p60 = por %p58, %p59
      %p61 = scmp.ne.s32.totalorder %s53, %s56
      %p62 = scmp.eq.s32.totalorder %s22, 0
      %p63 = por %p61, %p62
      %p64 = scmp.ne.s32.totalorder %s53, %s56
      %p65 = scmp.eq.s32.totalorder %s27, 3
      %p66 = por %p64, %p65
      %p67 = scmp.ne.s32.totalorder %s56, %s57
      %p68 = scmp.eq.s32.totalorder %s27, 0
      %p69 = por %p67, %p68
      %p70 = scmp.ne.s32.totalorder %s56, %s57
      %p71 = scmp.eq.s32.totalorder %s28, 3
      %p72 = por %p70, %p71
      %p74 = scmp.ne.s32.totalorder %s57, %s73
      %p75 = scmp.eq.s32.totalorder %s28, 0
      %p76 = por %p74, %p75
      %s78 = sadd.s32 %s77, 1
      %p81 = scmp.eq.s32.totalorder %s22, 3
      %p82 = scmp.ne.s32.totalorder %s77, %s79
      %p83 = scmp.eq.s32.totalorder %s22, 0
      %p84 = por %p82, %p83
      %p85 = scmp.ne.s32.totalorder %s77, %s79
      %p86 = scmp.eq.s32.totalorder %s27, 3
      %p87 = por %p85, %p86
      %p88 = scmp.ne.s32.totalorder %s79, %s80
      %p89 = scmp.eq.s32.totalorder %s27, 0
      %p90 = por %p88, %p89
      %p91 = scmp.ne.s32.totalorder %s79, %s80
      %p92 = scmp.eq.s32.totalorder %s28, 3
      %p93 = por %p91, %p92
      %p95 = scmp.ne.s32.totalorder %s80, %s94
      %p96 = scmp.eq.s32.totalorder %s28, 0
      %p97 = por %p95, %p96
      %s99 = sadd.s32 %s98, 1
      %p102 = scmp.eq.s32.totalorder %s22, 3
      %p103 = scmp.ne.s32.totalorder %s98, %s100
      %p104 = scmp.eq.s32.totalorder %s22, 0
      %p105 = por %p103, %p104
      %p106 = scmp.ne.s32.totalorder %s98, %s100
      %p107 = scmp.eq.s32.totalorder %s27, 3
      %p108 = por %p106, %p107
      %p109 = scmp.ne.s32.totalorder %s100, %s101
      %p110 = scmp.eq.s32.totalorder %s27, 0
      %p111 = por %p109, %p110
      %p112 = scmp.ne.s32.totalorder %s100, %s101
      %p113 = scmp.eq.s32.totalorder %s28, 3
      %p114 = por %p112, %p113
      %p116 = scmp.ne.s32.totalorder %s101, %s115
      %p117 = scmp.eq.s32.totalorder %s28, 0
      %p118 = por %p116, %p117
      %s120 = sadd.s32 %s119, 1
      %p123 = scmp.eq.s32.totalorder %s22, 3
      %p124 = scmp.ne.s32.totalorder %s119, %s121
      %p125 = scmp.eq.s32.totalorder %s22, 0
      %p126 = por %p124, %p125
      %p127 = scmp.ne.s32.totalorder %s119, %s121
      %p128 = scmp.eq.s32.totalorder %s27, 3
      %p129 = por %p127, %p128
      %p130 = scmp.ne.s32.totalorder %s121, %s122
      %p131 = scmp.eq.s32.totalorder %s27, 0
      %p132 = por %p130, %p131
      %p133 = scmp.ne.s32.totalorder %s121, %s122
      %p134 = scmp.eq.s32.totalorder %s28, 3
      %p135 = por %p133, %p134
      %p137 = scmp.ne.s32.totalorder %s122, %s136
      %p138 = scmp.eq.s32.totalorder %s28, 0
      %p139 = por %p137, %p138
      %p140 = scmp.le.s32.totalorder 1, %s22
      %p141 = scmp.lt.s32.totalorder %s22, 5
      %p142 = pnand %p140, %p141
      %p143 = pneg %p142
      // Predicated region
      $region9: #{tpu_custom_call.1} parent=5 // pred_check
        _
      $region10: #{tpu_custom_call.1} parent=5 // pred_check_branch
        %145 = sbr.rel (%p142) target = $region12
      $region11: #{tpu_custom_call.1} parent=5 // pred_region
        %s146 = ssub.s32 %s22, 1
        // Predicated region
        $region13: #{tpu_custom_call.1} parent=11 // pred_check
          %p147 = pneg %p43
        $region14: #{tpu_custom_call.1} parent=11 // pred_check_branch
          %149 = sbr.rel (%p147) target = $region16
        $region15: #{tpu_custom_call.1} parent=11 // pred_region
          _
        $region16: #{tpu_custom_call.1} parent=11 // pred_fallthru
          _
        // Predicated region
        $region17: #{tpu_custom_call.1} parent=11 // pred_check
          %p150 = pneg %p90
        $region18: #{tpu_custom_call.1} parent=11 // pred_check_branch
          %152 = sbr.rel (%p150) target = $region20
        $region19: #{tpu_custom_call.1} parent=11 // pred_region
          %s154 = ssub.s32 6144, 6144
          %155 = vsyncadd [#allocation9], %s154
          %s156 = sshll.u32 [#allocation8], 4
          %s157 = int_to_ptr.vmem [resolvable:$true] %s156
          %162 = dma.hbm_to_vmem [thread:$0]  %s3, 6144, %s157, [#allocation9], 384, 384, 24
        $region20: #{tpu_custom_call.1} parent=11 // pred_fallthru
          _
        // Predicated region
        $region21: #{tpu_custom_call.1} parent=11 // pred_check
          %p163 = pneg %p111
        $region22: #{tpu_custom_call.1} parent=11 // pred_check_branch
          %165 = sbr.rel (%p163) target = $region24
        $region23: #{tpu_custom_call.1} parent=11 // pred_region
          _
        $region24: #{tpu_custom_call.1} parent=11 // pred_fallthru
          _
      $region12: #{tpu_custom_call.1} parent=5 // pred_fallthru
        _
      %p166 = scmp.lt.s32.totalorder %s22, 4
      // Predicated region
      $region25: #{tpu_custom_call.1} parent=5 // pred_check
        %p167 = pneg %p166
      $region26: #{tpu_custom_call.1} parent=5 // pred_check_branch
        %169 = sbr.rel (%p167) target = $region28
      $region27: #{tpu_custom_call.1} parent=5 // pred_region
        // Predicated region
        $region29: #{tpu_custom_call.1} parent=27 // pred_check
          %p170 = pneg %p63
        $region30: #{tpu_custom_call.1} parent=27 // pred_check_branch
          %172 = sbr.rel (%p170) target = $region32
        $region31: #{tpu_custom_call.1} parent=27 // pred_region
          %s173 = sand.u32 %s53, 1
          %s174 = scalar_lea.sflag [#allocation6], %s173
          %s175 = sand.u32 %s53, 1
          %s176 = smul.addr %s175, 96
          %s177 = scalar_lea.vmem [#allocation5], %s176
          %s178 = smul.u32 4, %s22
          %s180 = ssub.s32 1536, 1536
          %181 = vsyncadd %s174, %s180
          %s182 = smul.addr %s178, 3
          %s183 = smul.addr %s182, 128
          %s184 = scalar_lea.hbm %s2, %s183
          %s185 = sshll.u32 %s177, 4
          %s186 = int_to_ptr.vmem [resolvable:$true] %s185
          %191 = dma.hbm_to_vmem [thread:$0]  %s184, 1536, %s186, %s174, 384, 384, 24
        $region32: #{tpu_custom_call.1} parent=27 // pred_fallthru
          _
      $region28: #{tpu_custom_call.1} parent=5 // pred_fallthru
        _
      %p192 = scmp.le.s32.totalorder 1, %s22
      %p193 = scmp.lt.s32.totalorder %s22, 5
      %p194 = pnand %p192, %p193
      %p195 = pneg %p194
      // Predicated region
      $region33: #{tpu_custom_call.1} parent=5 // pred_check
        _
      $region34: #{tpu_custom_call.1} parent=5 // pred_check_branch
        %197 = sbr.rel (%p194) target = $region36
      $region35: #{tpu_custom_call.1} parent=5 // pred_region
        %s198 = ssub.s32 %s22, 1
        %s199 = sand.u32 %s56, 1
        %s200 = scalar_lea.sflag [#allocation6], %s199
        %s201 = sand.u32 %s56, 1
        %s202 = smul.addr %s201, 96
        %s203 = scalar_lea.vmem [#allocation5], %s202
        // Predicated region
        $region37: #{tpu_custom_call.1} parent=35 // pred_check
          %p204 = pneg %p69
        $region38: #{tpu_custom_call.1} parent=35 // pred_check_branch
          %206 = sbr.rel (%p204) target = $region40
        $region39: #{tpu_custom_call.1} parent=35 // pred_region
          %207 = dma.done %s200, 1536
        $region40: #{tpu_custom_call.1} parent=35 // pred_fallthru
          _
        // Predicated region
        $region41: #{tpu_custom_call.1} parent=35 // pred_check
          %p208 = pneg %p90
        $region42: #{tpu_custom_call.1} parent=35 // pred_check_branch
          %210 = sbr.rel (%p208) target = $region44
        $region43: #{tpu_custom_call.1} parent=35 // pred_region
          %211 = dma.done [#allocation9], 6144
        $region44: #{tpu_custom_call.1} parent=35 // pred_fallthru
          _
        %p212 = pneg %p43
        %p213 = pneg %p40
        %s214 = sand.u32 %s56, 1
        %s215 = scalar_lea.sflag [#allocation6], %s214
        %s216 = sand.u32 %s56, 1
        %s217 = smul.addr %s216, 96
        %s218 = scalar_lea.vmem [#allocation5], %s217
        %p219 = pneg %p69
        %p220 = pneg %p66
        %p221 = pneg %p90
        %p222 = pneg %p87
        %p223 = pneg %p111
        %p224 = pneg %p108
        %p225 = pneg %p132
        %p226 = pneg %p129
        %s227 = smul.u32 4, %s27
        %s228 = smul.u32 %s27, 4
        %s229 = sld [smem:[#allocation4]]
        %p230 = scmp.eq.s32.totalorder %s27, 0
        // Predicated region
        $region45: #{tpu_custom_call.1} parent=35 // pred_check
          %p231 = pneg %p230
        $region46: #{tpu_custom_call.1} parent=35 // pred_check_branch
          %233 = sbr.rel (%p231) target = $region48
        $region47: #{tpu_custom_call.1} parent=35 // pred_region
          %234 = vst [vmem:[#allocation2] sm:$0xff] 0.0
        $region48: #{tpu_custom_call.1} parent=35 // pred_fallthru
          _
        %p235 = scmp.lt.s32.totalorder %s228, %s229
        // Predicated region
        $region49: #{tpu_custom_call.1} parent=35 // pred_check
          %p236 = pneg %p235
        $region50: #{tpu_custom_call.1} parent=35 // pred_check_branch
          %238 = sbr.rel (%p236) target = $region52
        $region51: #{tpu_custom_call.1} parent=35 // pred_region
          %v239 = vld [vmem:[%s1] sm:$0xff]
          %v240 = vld [vmem:[#allocation8] sm:$0xff]
          %v241 = vld [vmem:[#allocation8 + $0x8] sm:$0xff]
          %v242 = vld [vmem:[#allocation8 + $0x10] sm:$0xff]
          %v243 = vld [vmem:[#allocation8 + $0x18] sm:$0xff]
          %v244 = vld [vmem:[#allocation8 + $0x20] sm:$0xff]
          %v245 = vld [vmem:[#allocation8 + $0x28] sm:$0xff]
          %v246 = vld [vmem:[#allocation8 + $0x30] sm:$0xff]
          %v247 = vld [vmem:[#allocation8 + $0x38] sm:$0xff]
          %v248 = vld [vmem:[#allocation8 + $0x40] sm:$0xff]
          %v249 = vld [vmem:[#allocation8 + $0x48] sm:$0xff]
          %v250 = vld [vmem:[#allocation8 + $0x50] sm:$0xff]
          %v251 = vld [vmem:[#allocation8 + $0x58] sm:$0xff]
          %v252 = vld [vmem:[#allocation8 + $0x60] sm:$0xff]
          %v253 = vld [vmem:[#allocation8 + $0x68] sm:$0xff]
          %v254 = vld [vmem:[#allocation8 + $0x70] sm:$0xff]
          %v255 = vld [vmem:[#allocation8 + $0x78] sm:$0xff]
          %v256 = vld [vmem:[#allocation8 + $0x80] sm:$0xff]
          %v257 = vld [vmem:[#allocation8 + $0x88] sm:$0xff]
          %v258 = vld [vmem:[#allocation8 + $0x90] sm:$0xff]
          %v259 = vld [vmem:[#allocation8 + $0x98] sm:$0xff]
          %v260 = vld [vmem:[#allocation8 + $0xa0] sm:$0xff]
          %v261 = vld [vmem:[#allocation8 + $0xa8] sm:$0xff]
          %v262 = vld [vmem:[#allocation8 + $0xb0] sm:$0xff]
          %v263 = vld [vmem:[#allocation8 + $0xb8] sm:$0xff]
          %v264 = vld [vmem:[#allocation8 + $0xc0] sm:$0xff]
          %v265 = vld [vmem:[#allocation8 + $0xc8] sm:$0xff]
          %v266 = vld [vmem:[#allocation8 + $0xd0] sm:$0xff]
          %v267 = vld [vmem:[#allocation8 + $0xd8] sm:$0xff]
          %v268 = vld [vmem:[#allocation8 + $0xe0] sm:$0xff]
          %v269 = vld [vmem:[#allocation8 + $0xe8] sm:$0xff]
          %v270 = vld [vmem:[#allocation8 + $0xf0] sm:$0xff]
          %v271 = vld [vmem:[#allocation8 + $0xf8] sm:$0xff]
          %v272 = vld [vmem:[#allocation8 + $0x100] sm:$0xff]
          %v273 = vld [vmem:[#allocation8 + $0x108] sm:$0xff]
          %v274 = vld [vmem:[#allocation8 + $0x110] sm:$0xff]
          %v275 = vld [vmem:[#allocation8 + $0x118] sm:$0xff]
          %v276 = vld [vmem:[#allocation8 + $0x120] sm:$0xff]
          %v277 = vld [vmem:[#allocation8 + $0x128] sm:$0xff]
          %v278 = vld [vmem:[#allocation8 + $0x130] sm:$0xff]
          %v279 = vld [vmem:[#allocation8 + $0x138] sm:$0xff]
          %v280 = vld [vmem:[#allocation8 + $0x140] sm:$0xff]
          %v281 = vld [vmem:[#allocation8 + $0x148] sm:$0xff]
          %v282 = vld [vmem:[#allocation8 + $0x150] sm:$0xff]
          %v283 = vld [vmem:[#allocation8 + $0x158] sm:$0xff]
          %v284 = vld [vmem:[#allocation8 + $0x160] sm:$0xff]
          %v285 = vld [vmem:[#allocation8 + $0x168] sm:$0xff]
          %v286 = vld [vmem:[#allocation8 + $0x170] sm:$0xff]
          %v287 = vld [vmem:[#allocation8 + $0x178] sm:$0xff]
          %v288 = vld [vmem:[%s4] sm:$0x7]
          %v289 = vld [vmem:[#allocation2] sm:$0xff]
          %v290 = vld [vmem:[%s203] sm:$0xff]
          %v291 = vld [vmem:[%s203 + $0x8] sm:$0xff]
          %v292 = vld [vmem:[%s203 + $0x10] sm:$0xff]
          %v294 = vlaneseq
          %v295 = vshrl.u32 %v294, 7
          %v296 = vsub.s32 0, %v295
          %v297 = vrot.slane %v288, %v296
          %v298 = vlaneseq
          %v299 = vshrl.u32 %v298, 7
          %v300 = vsub.s32 1, %v299
          %v301 = vrot.slane %v288, %v300
          %v302 = vlaneseq
          %v303 = vshrl.u32 %v302, 7
          %v304 = vsub.s32 2, %v303
          %v305 = vrot.slane %v288, %v304
          %309 = vmatprep.subr.mxu0 %v241
          %310 = vmatpush1.msra.mxu0 %v240
          %311 = vmatprep.subr.mxu0 %v244
          %312 = vmatpush1.msra.mxu0 %v243
          %313 = vmatprep.subr.mxu0 %v247
          %314 = vmatpush1.msra.mxu0 %v246
          %315 = vmatprep.subr.mxu0 %v250
          %316 = vmatpush1.msra.mxu0 %v249
          %317 = vmatprep.subr.mxu0 %v253
          %318 = vmatpush1.msra.mxu0 %v252
          %319 = vmatprep.subr.mxu0 %v256
          %320 = vmatpush1.msra.mxu0 %v255
          %321 = vmatprep.subr.mxu0 %v259
          %322 = vmatpush1.msra.mxu0 %v258
          %323 = vmatprep.subr.mxu0 %v262
          %324 = vmatpush1.msra.mxu0 %v261
          %325 = vmatprep.subr.mxu0 %v265
          %326 = vmatpush1.msra.mxu0 %v264
          %327 = vmatprep.subr.mxu0 %v268
          %328 = vmatpush1.msra.mxu0 %v267
          %329 = vmatprep.subr.mxu0 %v271
          %330 = vmatpush1.msra.mxu0 %v270
          %331 = vmatprep.subr.mxu0 %v274
          %332 = vmatpush1.msra.mxu0 %v273
          %333 = vmatprep.subr.mxu0 %v277
          %334 = vmatpush1.msra.mxu0 %v276
          %335 = vmatprep.subr.mxu0 %v280
          %336 = vmatpush1.msra.mxu0 %v279
          %337 = vmatprep.subr.mxu0 %v283
          %338 = vmatpush1.msra.mxu0 %v282
          %339 = vmatprep.subr.mxu0 %v286
          %340 = vmatpush1.msra.mxu0 %v285
          %341 = vmatprep.subr.mxu0 0.0
          %342 = vmatpush1.msra.mxu0 0.0
          %343 = vmatprep.subr.mxu0 0.0
          %344 = vmatpush1.msra.mxu0 0.0
          %345 = vmatprep.subr.mxu0 0.0
          %346 = vmatpush1.msra.mxu0 0.0
          %347 = vmatprep.subr.mxu0 0.0
          %348 = vmatpush1.msra.mxu0 0.0
          %349 = vmatprep.subr.mxu0 0.0
          %350 = vmatpush1.msra.mxu0 0.0
          %351 = vmatprep.subr.mxu0 0.0
          %352 = vmatpush1.msra.mxu0 0.0
          %353 = vmatprep.subr.mxu0 0.0
          %354 = vmatpush1.msra.mxu0 0.0
          %355 = vmatprep.subr.mxu0 0.0
          %356 = vmatpush1.msra.mxu0 0.0
          %357 = vmatprep.subr.mxu0 0.0
          %358 = vmatpush1.msra.mxu0 0.0
          %359 = vmatprep.subr.mxu0 0.0
          %360 = vmatpush1.msra.mxu0 0.0
          %361 = vmatprep.subr.mxu0 0.0
          %362 = vmatpush1.msra.mxu0 0.0
          %363 = vmatprep.subr.mxu0 0.0
          %364 = vmatpush1.msra.mxu0 0.0
          %365 = vmatprep.subr.mxu0 0.0
          %366 = vmatpush1.msra.mxu0 0.0
          %367 = vmatprep.subr.mxu0 0.0
          %368 = vmatpush1.msra.mxu0 0.0
          %369 = vmatprep.subr.mxu0 0.0
          %370 = vmatpush1.msra.mxu0 0.0
          %371 = vmatprep.subr.mxu0 0.0
          %372 = vmatpush1.msra.mxu0 0.0
          %373 = vmatprep.mubr.f32.mxu0 0.0
          %374 = vmatmul.mubr.f32.gmra.mrb[0].mxu0 %v289
          %v375 = vpop.f32.mrb[0].mxu0
          %v376 = vadd.f32 %v297, %v375
          %v377 = vpop.f32.mrb[0].mxu0
          %v378 = vadd.f32 %v301, %v377
          %379 = vdwg.mxu0
          %380 = vmatprep.subr.mxu0 0.0
          %381 = vmatpush1.msra.mxu0 %v242
          %382 = vmatprep.subr.mxu0 0.0
          %383 = vmatpush1.msra.mxu0 %v245
          %384 = vmatprep.subr.mxu0 0.0
          %385 = vmatpush1.msra.mxu0 %v248
          %386 = vmatprep.subr.mxu0 0.0
          %387 = vmatpush1.msra.mxu0 %v251
          %388 = vmatprep.subr.mxu0 0.0
          %389 = vmatpush1.msra.mxu0 %v254
          %390 = vmatprep.subr.mxu0 0.0
          %391 = vmatpush1.msra.mxu0 %v257
          %392 = vmatprep.subr.mxu0 0.0
          %393 = vmatpush1.msra.mxu0 %v260
          %394 = vmatprep.subr.mxu0 0.0
          %395 = vmatpush1.msra.mxu0 %v263
          %396 = vmatprep.subr.mxu0 0.0
          %397 = vmatpush1.msra.mxu0 %v266
          %398 = vmatprep.subr.mxu0 0.0
          %399 = vmatpush1.msra.mxu0 %v269
          %400 = vmatprep.subr.mxu0 0.0
          %401 = vmatpush1.msra.mxu0 %v272
          %402 = vmatprep.subr.mxu0 0.0
          %403 = vmatpush1.msra.mxu0 %v275
          %404 = vmatprep.subr.mxu0 0.0
          %405 = vmatpush1.msra.mxu0 %v278
          %406 = vmatprep.subr.mxu0 0.0
          %407 = vmatpush1.msra.mxu0 %v281
          %408 = vmatprep.subr.mxu0 0.0
          %409 = vmatpush1.msra.mxu0 %v284
          %410 = vmatprep.subr.mxu0 0.0
          %411 = vmatpush1.msra.mxu0 %v287
          %412 = vmatprep.subr.mxu0 0.0
          %413 = vmatpush1.msra.mxu0 0.0
          %414 = vmatprep.subr.mxu0 0.0
          %415 = vmatpush1.msra.mxu0 0.0
          %416 = vmatprep.subr.mxu0 0.0
          %417 = vmatpush1.msra.mxu0 0.0
          %418 = vmatprep.subr.mxu0 0.0
          %419 = vmatpush1.msra.mxu0 0.0
          %420 = vmatprep.subr.mxu0 0.0
          %421 = vmatpush1.msra.mxu0 0.0
          %422 = vmatprep.subr.mxu0 0.0
          %423 = vmatpush1.msra.mxu0 0.0
          %424 = vmatprep.subr.mxu0 0.0
          %425 = vmatpush1.msra.mxu0 0.0
          %426 = vmatprep.subr.mxu0 0.0
          %427 = vmatpush1.msra.mxu0 0.0
          %428 = vmatprep.subr.mxu0 0.0
          %429 = vmatpush1.msra.mxu0 0.0
          %430 = vmatprep.subr.mxu0 0.0
          %431 = vmatpush1.msra.mxu0 0.0
          %432 = vmatprep.subr.mxu0 0.0
          %433 = vmatpush1.msra.mxu0 0.0
          %434 = vmatprep.subr.mxu0 0.0
          %435 = vmatpush1.msra.mxu0 0.0
          %436 = vmatprep.subr.mxu0 0.0
          %437 = vmatpush1.msra.mxu0 0.0
          %438 = vmatprep.subr.mxu0 0.0
          %439 = vmatpush1.msra.mxu0 0.0
          %440 = vmatprep.subr.mxu0 0.0
          %441 = vmatpush1.msra.mxu0 0.0
          %442 = vmatprep.subr.mxu0 0.0
          %443 = vmatpush1.msra.mxu0 0.0
          %444 = vmatprep.mubr.f32.mxu0 0.0
          %445 = vmatmul.mubr.f32.gmra.mrb[0].mxu0 %v289
          %v446 = vpop.f32.mrb[0].mxu0
          %v447 = vadd.f32 %v305, %v446
          %v448 = vpop.f32.mrb[0].mxu0
          %449 = vdwg.mxu0
          %v450 = vadd.f32 %v290, %v376
          %v451 = vxor.u32 %v450, 2147483648
          %v452 = vmul.f32 %v451, 1.442695
          %v453 = vpow.pop %v452
          %v454 = vadd.f32 %v453, 1.0
          %v455 = vrcp.pop %v454
          %v456 = vmul.f32 1.0, %v455
          %v457 = vadd.f32 %v291, %v378
          %v458 = vxor.u32 %v457, 2147483648
          %v459 = vmul.f32 %v458, 1.442695
          %v460 = vpow.pop %v459
          %v461 = vadd.f32 %v460, 1.0
          %v462 = vrcp.pop %v461
          %v463 = vmul.f32 1.0, %v462
          %v464 = vmul.f32 %v456, %v447
          %v465 = vadd.f32 %v292, %v464
          %v466 = vtanh.pop %v465
          %v467 = vsub.f32 1.0, %v463
          %v468 = vmul.f32 %v467, %v466
          %v469 = vmul.f32 %v463, %v289
          %v470 = vadd.f32 %v468, %v469
          %v471 = vstv %s228
          %vm472 = vcmp.gt.s32.totalorder %v239, %v471
          %v473 = vsel %vm472, 1, 0
          %474 = vset.pattern.permute.xlu0 0
          %475 = vperm.xlu0 %474, %v473
          %v476 = vpop.permute.xlu0 %475
          %vm477 = vcmp.eq.s32.totalorder %v476, 1
          %v478 = vsel %vm477, %v470, %v289
          %s479 = sadd.s32 %s228, 1
          %s480 = scalar_lea.vmem %s203, 24 [#allocation5]
          %v481 = vld [vmem:[%s480] sm:$0xff]
          %v482 = vld [vmem:[%s480 + $0x8] sm:$0xff]
          %v483 = vld [vmem:[%s480 + $0x10] sm:$0xff]
          %484 = vmatprep.subr.mxu0 %v241
          %485 = vmatpush1.msra.mxu0 %v240
          %486 = vmatprep.subr.mxu0 %v244
          %487 = vmatpush1.msra.mxu0 %v243
          %488 = vmatprep.subr.mxu0 %v247
          %489 = vmatpush1.msra.mxu0 %v246
          %490 = vmatprep.subr.mxu0 %v250
          %491 = vmatpush1.msra.mxu0 %v249
          %492 = vmatprep.subr.mxu0 %v253
          %493 = vmatpush1.msra.mxu0 %v252
          %494 = vmatprep.subr.mxu0 %v256
          %495 = vmatpush1.msra.mxu0 %v255
          %496 = vmatprep.subr.mxu0 %v259
          %497 = vmatpush1.msra.mxu0 %v258
          %498 = vmatprep.subr.mxu0 %v262
          %499 = vmatpush1.msra.mxu0 %v261
          %500 = vmatprep.subr.mxu0 %v265
          %501 = vmatpush1.msra.mxu0 %v264
          %502 = vmatprep.subr.mxu0 %v268
          %503 = vmatpush1.msra.mxu0 %v267
          %504 = vmatprep.subr.mxu0 %v271
          %505 = vmatpush1.msra.mxu0 %v270
          %506 = vmatprep.subr.mxu0 %v274
          %507 = vmatpush1.msra.mxu0 %v273
          %508 = vmatprep.subr.mxu0 %v277
          %509 = vmatpush1.msra.mxu0 %v276
          %510 = vmatprep.subr.mxu0 %v280
          %511 = vmatpush1.msra.mxu0 %v279
          %512 = vmatprep.subr.mxu0 %v283
          %513 = vmatpush1.msra.mxu0 %v282
          %514 = vmatprep.subr.mxu0 %v286
          %515 = vmatpush1.msra.mxu0 %v285
          %516 = vmatprep.subr.mxu0 0.0
          %517 = vmatpush1.msra.mxu0 0.0
          %518 = vmatprep.subr.mxu0 0.0
          %519 = vmatpush1.msra.mxu0 0.0
          %520 = vmatprep.subr.mxu0 0.0
          %521 = vmatpush1.msra.mxu0 0.0
          %522 = vmatprep.subr.mxu0 0.0
          %523 = vmatpush1.msra.mxu0 0.0
          %524 = vmatprep.subr.mxu0 0.0
          %525 = vmatpush1.msra.mxu0 0.0
          %526 = vmatprep.subr.mxu0 0.0
          %527 = vmatpush1.msra.mxu0 0.0
          %528 = vmatprep.subr.mxu0 0.0
          %529 = vmatpush1.msra.mxu0 0.0
          %530 = vmatprep.subr.mxu0 0.0
          %531 = vmatpush1.msra.mxu0 0.0
          %532 = vmatprep.subr.mxu0 0.0
          %533 = vmatpush1.msra.mxu0 0.0
          %534 = vmatprep.subr.mxu0 0.0
          %535 = vmatpush1.msra.mxu0 0.0
          %536 = vmatprep.subr.mxu0 0.0
          %537 = vmatpush1.msra.mxu0 0.0
          %538 = vmatprep.subr.mxu0 0.0
          %539 = vmatpush1.msra.mxu0 0.0
          %540 = vmatprep.subr.mxu0 0.0
          %541 = vmatpush1.msra.mxu0 0.0
          %542 = vmatprep.subr.mxu0 0.0
          %543 = vmatpush1.msra.mxu0 0.0
          %544 = vmatprep.subr.mxu0 0.0
          %545 = vmatpush1.msra.mxu0 0.0
          %546 = vmatprep.subr.mxu0 0.0
          %547 = vmatpush1.msra.mxu0 0.0
          %548 = vmatprep.mubr.f32.mxu0 0.0
          %549 = vmatmul.mubr.f32.gmra.mrb[0].mxu0 %v478
          %v550 = vpop.f32.mrb[0].mxu0
          %v551 = vadd.f32 %v297, %v550
          %v552 = vpop.f32.mrb[0].mxu0
          %v553 = vadd.f32 %v301, %v552
          %554 = vdwg.mxu0
          %555 = vmatprep.subr.mxu0 0.0
          %556 = vmatpush1.msra.mxu0 %v242
          %557 = vmatprep.subr.mxu0 0.0
          %558 = vmatpush1.msra.mxu0 %v245
          %559 = vmatprep.subr.mxu0 0.0
          %560 = vmatpush1.msra.mxu0 %v248
          %561 = vmatprep.subr.mxu0 0.0
          %562 = vmatpush1.msra.mxu0 %v251
          %563 = vmatprep.subr.mxu0 0.0
          %564 = vmatpush1.msra.mxu0 %v254
          %565 = vmatprep.subr.mxu0 0.0
          %566 = vmatpush1.msra.mxu0 %v257
          %567 = vmatprep.subr.mxu0 0.0
          %568 = vmatpush1.msra.mxu0 %v260
          %569 = vmatprep.subr.mxu0 0.0
          %570 = vmatpush1.msra.mxu0 %v263
          %571 = vmatprep.subr.mxu0 0.0
          %572 = vmatpush1.msra.mxu0 %v266
          %573 = vmatprep.subr.mxu0 0.0
          %574 = vmatpush1.msra.mxu0 %v269
          %575 = vmatprep.subr.mxu0 0.0
          %576 = vmatpush1.msra.mxu0 %v272
          %577 = vmatprep.subr.mxu0 0.0
          %578 = vmatpush1.msra.mxu0 %v275
          %579 = vmatprep.subr.mxu0 0.0
          %580 = vmatpush1.msra.mxu0 %v278
          %581 = vmatprep.subr.mxu0 0.0
          %582 = vmatpush1.msra.mxu0 %v281
          %583 = vmatprep.subr.mxu0 0.0
          %584 = vmatpush1.msra.mxu0 %v284
          %585 = vmatprep.subr.mxu0 0.0
          %586 = vmatpush1.msra.mxu0 %v287
          %587 = vmatprep.subr.mxu0 0.0
          %588 = vmatpush1.msra.mxu0 0.0
          %589 = vmatprep.subr.mxu0 0.0
          %590 = vmatpush1.msra.mxu0 0.0
          %591 = vmatprep.subr.mxu0 0.0
          %592 = vmatpush1.msra.mxu0 0.0
          %593 = vmatprep.subr.mxu0 0.0
          %594 = vmatpush1.msra.mxu0 0.0
          %595 = vmatprep.subr.mxu0 0.0
          %596 = vmatpush1.msra.mxu0 0.0
          %597 = vmatprep.subr.mxu0 0.0
          %598 = vmatpush1.msra.mxu0 0.0
          %599 = vmatprep.subr.mxu0 0.0
          %600 = vmatpush1.msra.mxu0 0.0
          %601 = vmatprep.subr.mxu0 0.0
          %602 = vmatpush1.msra.mxu0 0.0
          %603 = vmatprep.subr.mxu0 0.0
          %604 = vmatpush1.msra.mxu0 0.0
          %605 = vmatprep.subr.mxu0 0.0
          %606 = vmatpush1.msra.mxu0 0.0
          %607 = vmatprep.subr.mxu0 0.0
          %608 = vmatpush1.msra.mxu0 0.0
          %609 = vmatprep.subr.mxu0 0.0
          %610 = vmatpush1.msra.mxu0 0.0
          %611 = vmatprep.subr.mxu0 0.0
          %612 = vmatpush1.msra.mxu0 0.0
          %613 = vmatprep.subr.mxu0 0.0
          %614 = vmatpush1.msra.mxu0 0.0
          %615 = vmatprep.subr.mxu0 0.0
          %616 = vmatpush1.msra.mxu0 0.0
          %617 = vmatprep.subr.mxu0 0.0
          %618 = vmatpush1.msra.mxu0 0.0
          %619 = vmatprep.mubr.f32.mxu0 0.0
          %620 = vmatmul.mubr.f32.gmra.mrb[0].mxu0 %v478
          %v621 = vpop.f32.mrb[0].mxu0
          %v622 = vadd.f32 %v305, %v621
          %v623 = vpop.f32.mrb[0].mxu0
          %624 = vdwg.mxu0
          %v625 = vadd.f32 %v481, %v551
          %v626 = vxor.u32 %v625, 2147483648
          %v627 = vmul.f32 %v626, 1.442695
          %v628 = vpow.pop %v627
          %v629 = vadd.f32 %v628, 1.0
          %v630 = vrcp.pop %v629
          %v631 = vmul.f32 1.0, %v630
          %v632 = vadd.f32 %v482, %v553
          %v633 = vxor.u32 %v632, 2147483648
          %v634 = vmul.f32 %v633, 1.442695
          %v635 = vpow.pop %v634
          %v636 = vadd.f32 %v635, 1.0
          %v637 = vrcp.pop %v636
          %v638 = vmul.f32 1.0, %v637
          %v639 = vmul.f32 %v631, %v622
          %v640 = vadd.f32 %v483, %v639
          %v641 = vtanh.pop %v640
          %v642 = vsub.f32 1.0, %v638
          %v643 = vmul.f32 %v642, %v641
          %v644 = vmul.f32 %v638, %v478
          %v645 = vadd.f32 %v643, %v644
          %v646 = vstv %s479
          %vm647 = vcmp.gt.s32.totalorder %v239, %v646
          %v648 = vsel %vm647, 1, 0
          %649 = vset.pattern.permute.xlu0 0
          %650 = vperm.xlu0 %649, %v648
          %v651 = vpop.permute.xlu0 %650
          %vm652 = vcmp.eq.s32.totalorder %v651, 1
          %v653 = vsel %vm652, %v645, %v478
          %s654 = sadd.s32 %s228, 2
          %s655 = scalar_lea.vmem %s203, 48 [#allocation5]
          %v656 = vld [vmem:[%s655] sm:$0xff]
          %v657 = vld [vmem:[%s655 + $0x8] sm:$0xff]
          %v658 = vld [vmem:[%s655 + $0x10] sm:$0xff]
          %659 = vmatprep.subr.mxu0 %v241
          %660 = vmatpush1.msra.mxu0 %v240
          %661 = vmatprep.subr.mxu0 %v244
          %662 = vmatpush1.msra.mxu0 %v243
          %663 = vmatprep.subr.mxu0 %v247
          %664 = vmatpush1.msra.mxu0 %v246
          %665 = vmatprep.subr.mxu0 %v250
          %666 = vmatpush1.msra.mxu0 %v249
          %667 = vmatprep.subr.mxu0 %v253
          %668 = vmatpush1.msra.mxu0 %v252
          %669 = vmatprep.subr.mxu0 %v256
          %670 = vmatpush1.msra.mxu0 %v255
          %671 = vmatprep.subr.mxu0 %v259
          %672 = vmatpush1.msra.mxu0 %v258
          %673 = vmatprep.subr.mxu0 %v262
          %674 = vmatpush1.msra.mxu0 %v261
          %675 = vmatprep.subr.mxu0 %v265
          %676 = vmatpush1.msra.mxu0 %v264
          %677 = vmatprep.subr.mxu0 %v268
          %678 = vmatpush1.msra.mxu0 %v267
          %679 = vmatprep.subr.mxu0 %v271
          %680 = vmatpush1.msra.mxu0 %v270
          %681 = vmatprep.subr.mxu0 %v274
          %682 = vmatpush1.msra.mxu0 %v273
          %683 = vmatprep.subr.mxu0 %v277
          %684 = vmatpush1.msra.mxu0 %v276
          %685 = vmatprep.subr.mxu0 %v280
          %686 = vmatpush1.msra.mxu0 %v279
          %687 = vmatprep.subr.mxu0 %v283
          %688 = vmatpush1.msra.mxu0 %v282
          %689 = vmatprep.subr.mxu0 %v286
          %690 = vmatpush1.msra.mxu0 %v285
          %691 = vmatprep.subr.mxu0 0.0
          %692 = vmatpush1.msra.mxu0 0.0
          %693 = vmatprep.subr.mxu0 0.0
          %694 = vmatpush1.msra.mxu0 0.0
          %695 = vmatprep.subr.mxu0 0.0
          %696 = vmatpush1.msra.mxu0 0.0
          %697 = vmatprep.subr.mxu0 0.0
          %698 = vmatpush1.msra.mxu0 0.0
          %699 = vmatprep.subr.mxu0 0.0
          %700 = vmatpush1.msra.mxu0 0.0
          %701 = vmatprep.subr.mxu0 0.0
          %702 = vmatpush1.msra.mxu0 0.0
          %703 = vmatprep.subr.mxu0 0.0
          %704 = vmatpush1.msra.mxu0 0.0
          %705 = vmatprep.subr.mxu0 0.0
          %706 = vmatpush1.msra.mxu0 0.0
          %707 = vmatprep.subr.mxu0 0.0
          %708 = vmatpush1.msra.mxu0 0.0
          %709 = vmatprep.subr.mxu0 0.0
          %710 = vmatpush1.msra.mxu0 0.0
          %711 = vmatprep.subr.mxu0 0.0
          %712 = vmatpush1.msra.mxu0 0.0
          %713 = vmatprep.subr.mxu0 0.0
          %714 = vmatpush1.msra.mxu0 0.0
          %715 = vmatprep.subr.mxu0 0.0
          %716 = vmatpush1.msra.mxu0 0.0
          %717 = vmatprep.subr.mxu0 0.0
          %718 = vmatpush1.msra.mxu0 0.0
          %719 = vmatprep.subr.mxu0 0.0
          %720 = vmatpush1.msra.mxu0 0.0
          %721 = vmatprep.subr.mxu0 0.0
          %722 = vmatpush1.msra.mxu0 0.0
          %723 = vmatprep.mubr.f32.mxu0 0.0
          %724 = vmatmul.mubr.f32.gmra.mrb[0].mxu0 %v653
          %v725 = vpop.f32.mrb[0].mxu0
          %v726 = vadd.f32 %v297, %v725
          %v727 = vpop.f32.mrb[0].mxu0
          %v728 = vadd.f32 %v301, %v727
          %729 = vdwg.mxu0
          %730 = vmatprep.subr.mxu0 0.0
          %731 = vmatpush1.msra.mxu0 %v242
          %732 = vmatprep.subr.mxu0 0.0
          %733 = vmatpush1.msra.mxu0 %v245
          %734 = vmatprep.subr.mxu0 0.0
          %735 = vmatpush1.msra.mxu0 %v248
          %736 = vmatprep.subr.mxu0 0.0
          %737 = vmatpush1.msra.mxu0 %v251
          %738 = vmatprep.subr.mxu0 0.0
          %739 = vmatpush1.msra.mxu0 %v254
          %740 = vmatprep.subr.mxu0 0.0
          %741 = vmatpush1.msra.mxu0 %v257
          %742 = vmatprep.subr.mxu0 0.0
          %743 = vmatpush1.msra.mxu0 %v260
          %744 = vmatprep.subr.mxu0 0.0
          %745 = vmatpush1.msra.mxu0 %v263
          %746 = vmatprep.subr.mxu0 0.0
          %747 = vmatpush1.msra.mxu0 %v266
          %748 = vmatprep.subr.mxu0 0.0
          %749 = vmatpush1.msra.mxu0 %v269
          %750 = vmatprep.subr.mxu0 0.0
          %751 = vmatpush1.msra.mxu0 %v272
          %752 = vmatprep.subr.mxu0 0.0
          %753 = vmatpush1.msra.mxu0 %v275
          %754 = vmatprep.subr.mxu0 0.0
          %755 = vmatpush1.msra.mxu0 %v278
          %756 = vmatprep.subr.mxu0 0.0
          %757 = vmatpush1.msra.mxu0 %v281
          %758 = vmatprep.subr.mxu0 0.0
          %759 = vmatpush1.msra.mxu0 %v284
          %760 = vmatprep.subr.mxu0 0.0
          %761 = vmatpush1.msra.mxu0 %v287
          %762 = vmatprep.subr.mxu0 0.0
          %763 = vmatpush1.msra.mxu0 0.0
          %764 = vmatprep.subr.mxu0 0.0
          %765 = vmatpush1.msra.mxu0 0.0
          %766 = vmatprep.subr.mxu0 0.0
          %767 = vmatpush1.msra.mxu0 0.0
          %768 = vmatprep.subr.mxu0 0.0
          %769 = vmatpush1.msra.mxu0 0.0
          %770 = vmatprep.subr.mxu0 0.0
          %771 = vmatpush1.msra.mxu0 0.0
          %772 = vmatprep.subr.mxu0 0.0
          %773 = vmatpush1.msra.mxu0 0.0
          %774 = vmatprep.subr.mxu0 0.0
          %775 = vmatpush1.msra.mxu0 0.0
          %776 = vmatprep.subr.mxu0 0.0
          %777 = vmatpush1.msra.mxu0 0.0
          %778 = vmatprep.subr.mxu0 0.0
          %779 = vmatpush1.msra.mxu0 0.0
          %780 = vmatprep.subr.mxu0 0.0
          %781 = vmatpush1.msra.mxu0 0.0
          %782 = vmatprep.subr.mxu0 0.0
          %783 = vmatpush1.msra.mxu0 0.0
          %784 = vmatprep.subr.mxu0 0.0
          %785 = vmatpush1.msra.mxu0 0.0
          %786 = vmatprep.subr.mxu0 0.0
          %787 = vmatpush1.msra.mxu0 0.0
          %788 = vmatprep.subr.mxu0 0.0
          %789 = vmatpush1.msra.mxu0 0.0
          %790 = vmatprep.subr.mxu0 0.0
          %791 = vmatpush1.msra.mxu0 0.0
          %792 = vmatprep.subr.mxu0 0.0
          %793 = vmatpush1.msra.mxu0 0.0
          %794 = vmatprep.mubr.f32.mxu0 0.0
          %795 = vmatmul.mubr.f32.gmra.mrb[0].mxu0 %v653
          %v796 = vpop.f32.mrb[0].mxu0
          %v797 = vadd.f32 %v305, %v796
          %v798 = vpop.f32.mrb[0].mxu0
          %799 = vdwg.mxu0
          %v800 = vadd.f32 %v656, %v726
          %v801 = vxor.u32 %v800, 2147483648
          %v802 = vmul.f32 %v801, 1.442695
          %v803 = vpow.pop %v802
          %v804 = vadd.f32 %v803, 1.0
          %v805 = vrcp.pop %v804
          %v806 = vmul.f32 1.0, %v805
          %v807 = vadd.f32 %v657, %v728
          %v808 = vxor.u32 %v807, 2147483648
          %v809 = vmul.f32 %v808, 1.442695
          %v810 = vpow.pop %v809
          %v811 = vadd.f32 %v810, 1.0
          %v812 = vrcp.pop %v811
          %v813 = vmul.f32 1.0, %v812
          %v814 = vmul.f32 %v806, %v797
          %v815 = vadd.f32 %v658, %v814
          %v816 = vtanh.pop %v815
          %v817 = vsub.f32 1.0, %v813
          %v818 = vmul.f32 %v817, %v816
          %v819 = vmul.f32 %v813, %v653
          %v820 = vadd.f32 %v818, %v819
          %v821 = vstv %s654
          %vm822 = vcmp.gt.s32.totalorder %v239, %v821
          %v823 = vsel %vm822, 1, 0
          %824 = vset.pattern.permute.xlu0 0
          %825 = vperm.xlu0 %824, %v823
          %v826 = vpop.permute.xlu0 %825
          %vm827 = vcmp.eq.s32.totalorder %v826, 1
          %v828 = vsel %vm827, %v820, %v653
          %s829 = sadd.s32 %s228, 3
          %s830 = scalar_lea.vmem %s203, 72 [#allocation5]
          %v831 = vld [vmem:[%s830] sm:$0xff]
          %v832 = vld [vmem:[%s830 + $0x8] sm:$0xff]
          %v833 = vld [vmem:[%s830 + $0x10] sm:$0xff]
          %834 = vmatprep.subr.mxu0 %v241
          %835 = vmatpush1.msra.mxu0 %v240
          %836 = vmatprep.subr.mxu0 %v244
          %837 = vmatpush1.msra.mxu0 %v243
          %838 = vmatprep.subr.mxu0 %v247
          %839 = vmatpush1.msra.mxu0 %v246
          %840 = vmatprep.subr.mxu0 %v250
          %841 = vmatpush1.msra.mxu0 %v249
          %842 = vmatprep.subr.mxu0 %v253
          %843 = vmatpush1.msra.mxu0 %v252
          %844 = vmatprep.subr.mxu0 %v256
          %845 = vmatpush1.msra.mxu0 %v255
          %846 = vmatprep.subr.mxu0 %v259
          %847 = vmatpush1.msra.mxu0 %v258
          %848 = vmatprep.subr.mxu0 %v262
          %849 = vmatpush1.msra.mxu0 %v261
          %850 = vmatprep.subr.mxu0 %v265
          %851 = vmatpush1.msra.mxu0 %v264
          %852 = vmatprep.subr.mxu0 %v268
          %853 = vmatpush1.msra.mxu0 %v267
          %854 = vmatprep.subr.mxu0 %v271
          %855 = vmatpush1.msra.mxu0 %v270
          %856 = vmatprep.subr.mxu0 %v274
          %857 = vmatpush1.msra.mxu0 %v273
          %858 = vmatprep.subr.mxu0 %v277
          %859 = vmatpush1.msra.mxu0 %v276
          %860 = vmatprep.subr.mxu0 %v280
          %861 = vmatpush1.msra.mxu0 %v279
          %862 = vmatprep.subr.mxu0 %v283
          %863 = vmatpush1.msra.mxu0 %v282
          %864 = vmatprep.subr.mxu0 %v286
          %865 = vmatpush1.msra.mxu0 %v285
          %866 = vmatprep.subr.mxu0 0.0
          %867 = vmatpush1.msra.mxu0 0.0
          %868 = vmatprep.subr.mxu0 0.0
          %869 = vmatpush1.msra.mxu0 0.0
          %870 = vmatprep.subr.mxu0 0.0
          %871 = vmatpush1.msra.mxu0 0.0
          %872 = vmatprep.subr.mxu0 0.0
          %873 = vmatpush1.msra.mxu0 0.0
          %874 = vmatprep.subr.mxu0 0.0
          %875 = vmatpush1.msra.mxu0 0.0
          %876 = vmatprep.subr.mxu0 0.0
          %877 = vmatpush1.msra.mxu0 0.0
          %878 = vmatprep.subr.mxu0 0.0
          %879 = vmatpush1.msra.mxu0 0.0
          %880 = vmatprep.subr.mxu0 0.0
          %881 = vmatpush1.msra.mxu0 0.0
          %882 = vmatprep.subr.mxu0 0.0
          %883 = vmatpush1.msra.mxu0 0.0
          %884 = vmatprep.subr.mxu0 0.0
          %885 = vmatpush1.msra.mxu0 0.0
          %886 = vmatprep.subr.mxu0 0.0
          %887 = vmatpush1.msra.mxu0 0.0
          %888 = vmatprep.subr.mxu0 0.0
          %889 = vmatpush1.msra.mxu0 0.0
          %890 = vmatprep.subr.mxu0 0.0
          %891 = vmatpush1.msra.mxu0 0.0
          %892 = vmatprep.subr.mxu0 0.0
          %893 = vmatpush1.msra.mxu0 0.0
          %894 = vmatprep.subr.mxu0 0.0
          %895 = vmatpush1.msra.mxu0 0.0
          %896 = vmatprep.subr.mxu0 0.0
          %897 = vmatpush1.msra.mxu0 0.0
          %898 = vmatprep.mubr.f32.mxu0 0.0
          %899 = vmatmul.mubr.f32.gmra.mrb[0].mxu0 %v828
          %v900 = vpop.f32.mrb[0].mxu0
          %v901 = vadd.f32 %v297, %v900
          %v902 = vpop.f32.mrb[0].mxu0
          %v903 = vadd.f32 %v301, %v902
          %904 = vdwg.mxu0
          %905 = vmatprep.subr.mxu0 0.0
          %906 = vmatpush1.msra.mxu0 %v242
          %907 = vmatprep.subr.mxu0 0.0
          %908 = vmatpush1.msra.mxu0 %v245
          %909 = vmatprep.subr.mxu0 0.0
          %910 = vmatpush1.msra.mxu0 %v248
          %911 = vmatprep.subr.mxu0 0.0
          %912 = vmatpush1.msra.mxu0 %v251
          %913 = vmatprep.subr.mxu0 0.0
          %914 = vmatpush1.msra.mxu0 %v254
          %915 = vmatprep.subr.mxu0 0.0
          %916 = vmatpush1.msra.mxu0 %v257
          %917 = vmatprep.subr.mxu0 0.0
          %918 = vmatpush1.msra.mxu0 %v260
          %919 = vmatprep.subr.mxu0 0.0
          %920 = vmatpush1.msra.mxu0 %v263
          %921 = vmatprep.subr.mxu0 0.0
          %922 = vmatpush1.msra.mxu0 %v266
          %923 = vmatprep.subr.mxu0 0.0
          %924 = vmatpush1.msra.mxu0 %v269
          %925 = vmatprep.subr.mxu0 0.0
          %926 = vmatpush1.msra.mxu0 %v272
          %927 = vmatprep.subr.mxu0 0.0
          %928 = vmatpush1.msra.mxu0 %v275
          %929 = vmatprep.subr.mxu0 0.0
          %930 = vmatpush1.msra.mxu0 %v278
          %931 = vmatprep.subr.mxu0 0.0
          %932 = vmatpush1.msra.mxu0 %v281
          %933 = vmatprep.subr.mxu0 0.0
          %934 = vmatpush1.msra.mxu0 %v284
          %935 = vmatprep.subr.mxu0 0.0
          %936 = vmatpush1.msra.mxu0 %v287
          %937 = vmatprep.subr.mxu0 0.0
          %938 = vmatpush1.msra.mxu0 0.0
          %939 = vmatprep.subr.mxu0 0.0
          %940 = vmatpush1.msra.mxu0 0.0
          %941 = vmatprep.subr.mxu0 0.0
          %942 = vmatpush1.msra.mxu0 0.0
          %943 = vmatprep.subr.mxu0 0.0
          %944 = vmatpush1.msra.mxu0 0.0
          %945 = vmatprep.subr.mxu0 0.0
          %946 = vmatpush1.msra.mxu0 0.0
          %947 = vmatprep.subr.mxu0 0.0
          %948 = vmatpush1.msra.mxu0 0.0
          %949 = vmatprep.subr.mxu0 0.0
          %950 = vmatpush1.msra.mxu0 0.0
          %951 = vmatprep.subr.mxu0 0.0
          %952 = vmatpush1.msra.mxu0 0.0
          %953 = vmatprep.subr.mxu0 0.0
          %954 = vmatpush1.msra.mxu0 0.0
          %955 = vmatprep.subr.mxu0 0.0
          %956 = vmatpush1.msra.mxu0 0.0
          %957 = vmatprep.subr.mxu0 0.0
          %958 = vmatpush1.msra.mxu0 0.0
          %959 = vmatprep.subr.mxu0 0.0
          %960 = vmatpush1.msra.mxu0 0.0
          %961 = vmatprep.subr.mxu0 0.0
          %962 = vmatpush1.msra.mxu0 0.0
          %963 = vmatprep.subr.mxu0 0.0
          %964 = vmatpush1.msra.mxu0 0.0
          %965 = vmatprep.subr.mxu0 0.0
          %966 = vmatpush1.msra.mxu0 0.0
          %967 = vmatprep.subr.mxu0 0.0
          %968 = vmatpush1.msra.mxu0 0.0
          %969 = vmatprep.mubr.f32.mxu0 0.0
          %970 = vmatmul.mubr.f32.gmra.mrb[0].mxu0 %v828
          %v971 = vpop.f32.mrb[0].mxu0
          %v972 = vadd.f32 %v305, %v971
          %v973 = vpop.f32.mrb[0].mxu0
          %974 = vdwg.mxu0
          %v975 = vadd.f32 %v831, %v901
          %v976 = vxor.u32 %v975, 2147483648
          %v977 = vmul.f32 %v976, 1.442695
          %v978 = vpow.pop %v977
          %v979 = vadd.f32 %v978, 1.0
          %v980 = vrcp.pop %v979
          %v981 = vmul.f32 1.0, %v980
          %v982 = vadd.f32 %v832, %v903
          %v983 = vxor.u32 %v982, 2147483648
          %v984 = vmul.f32 %v983, 1.442695
          %v985 = vpow.pop %v984
          %v986 = vadd.f32 %v985, 1.0
          %v987 = vrcp.pop %v986
          %v988 = vmul.f32 1.0, %v987
          %v989 = vmul.f32 %v981, %v972
          %v990 = vadd.f32 %v833, %v989
          %v991 = vtanh.pop %v990
          %v992 = vsub.f32 1.0, %v988
          %v993 = vmul.f32 %v992, %v991
          %v994 = vmul.f32 %v988, %v828
          %v995 = vadd.f32 %v993, %v994
          %v996 = vstv %s829
          %vm997 = vcmp.gt.s32.totalorder %v239, %v996
          %v998 = vsel %vm997, 1, 0
          %999 = vset.pattern.permute.xlu0 0
          %1000 = vperm.xlu0 %999, %v998
          %v1001 = vpop.permute.xlu0 %1000
          %vm1002 = vcmp.eq.s32.totalorder %v1001, 1
          %v1003 = vsel %vm1002, %v995, %v828
          %1004 = vst [vmem:[#allocation2] sm:$0xff] %v1003
        $region52: #{tpu_custom_call.1} parent=35 // pred_fallthru
          _
        %p1005 = scmp.eq.s32.totalorder %s27, 3
        // Predicated region
        $region53: #{tpu_custom_call.1} parent=35 // pred_check
          %p1006 = pneg %p1005
        $region54: #{tpu_custom_call.1} parent=35 // pred_check_branch
          %1008 = sbr.rel (%p1006) target = $region56
        $region55: #{tpu_custom_call.1} parent=35 // pred_region
          %v1009 = vld [vmem:[#allocation2] sm:$0xff]
          %v1010 = vmul.f32 %v1009, %v1009
          %1011 = vadd.xlane.f32.xlu0 %v1010
          %v1012 = vpop.xlane.xlu0 %1011
          %v1013 = vmax.f32 %v1012, 1e-12
          %v1014 = vrsqrt.pop %v1013
          %v1015 = vmul.f32 %v1009, %v1014
          %1016 = vst [vmem:[#allocation10] sm:$0xff] %v1015
        $region56: #{tpu_custom_call.1} parent=35 // pred_fallthru
          _
        // Predicated region
        $region57: #{tpu_custom_call.1} parent=35 // pred_check
          %p1017 = pneg %p129
        $region58: #{tpu_custom_call.1} parent=35 // pred_check_branch
          %1019 = sbr.rel (%p1017) target = $region60
        $region59: #{tpu_custom_call.1} parent=35 // pred_region
          %s1021 = ssub.s32 128, 128
          %1022 = vsyncadd [#allocation7], %s1021
          %s1024 = sshll.u32 [#allocation10], 4
          %s1025 = int_to_ptr.vmem [resolvable:$true] %s1024
          %1027 = dma.vmem_to_hbm [thread:$0]  %s1025, 128, %s5, [#allocation7]
        $region60: #{tpu_custom_call.1} parent=35 // pred_fallthru
          _
        // Predicated region
        $region61: #{tpu_custom_call.1} parent=35 // pred_check
          %p1028 = pneg %p129
        $region62: #{tpu_custom_call.1} parent=35 // pred_check_branch
          %1030 = sbr.rel (%p1028) target = $region64
        $region63: #{tpu_custom_call.1} parent=35 // pred_region
          %1031 = dma.done [#allocation7], 128
        $region64: #{tpu_custom_call.1} parent=35 // pred_fallthru
          _
      $region36: #{tpu_custom_call.1} parent=5 // pred_fallthru
        _
      %p1032 = scmp.le.s32.totalorder 2, %s22
      // Predicated region
      $region65: #{tpu_custom_call.1} parent=5 // pred_check
        %p1033 = pneg %p1032
      $region66: #{tpu_custom_call.1} parent=5 // pred_check_branch
        %1035 = sbr.rel (%p1033) target = $region68
      $region67: #{tpu_custom_call.1} parent=5 // pred_region
        %s1036 = ssub.s32 %s22, 2
      $region68: #{tpu_custom_call.1} parent=5 // pred_fallthru
        _
    $region6: #{tpu_custom_call.1} parent=1 // loop_footer
      %s26 = sadd.s32 1, %s22
    $region7: #{tpu_custom_call.1} parent=1 // loop_footer_branch
      %21 = sbr.rel target = $region3
    $region8: #{tpu_custom_call.1} parent=1 // loop_exit
      _
    %1037 = vsyncpa [#allocation6], 1
    %s1038 = scalar_lea.sflag [#allocation6], 1
    %1039 = vsyncpa %s1038, 1
    %1040 = vsyncpa [#allocation9], 1
    %1041 = vsyncpa [#allocation7], 1
    %s1042 = scalar_lea.sflag [#allocation7], 1
    %1043 = vsyncpa %s1042, 1

</llo_original>
